<compile_context>
chip_gen: v5e
topology: v5e:2x2
jax: 0.10.0
libtpu: 0.0.40
codegen_flags: <defaults>
</compile_context>

<pallas_src>
import functools
import math

import jax
import jax.numpy as jnp
from jax.experimental import pallas as pl
from jax.experimental.pallas import tpu as pltpu

_LANES = 128
_MAX_TILE_ROWS = 2048      # 3 inputs * 2 bufs * 2048*128*4B ~= 6 MiB double-buffered
_NCORES = 2                # leading "parallel" grid axis (sharded across TCs on v7x)
_HALF_LOG_2PI = 0.5 * math.log(2.0 * math.pi)


def _ll_kernel(mu_ref, sig_ref, y_ref, out_ref, *, total):
    """Accumulate masked Normal log-probs of one [tile_rows, 128] tile."""
    c = pl.program_id(0)                 # core / outer-parallel index
    i = pl.program_id(1)                 # row-tile index (reduction axis)
    n_inner = pl.num_programs(1)
    tile_rows = out_ref.shape[0]

    @pl.when(i == 0)
    def _():
        out_ref[...] = jnp.zeros_like(out_ref)

    mu = mu_ref[...].astype(jnp.float32)
    sig = sig_ref[...].astype(jnp.float32)
    y = y_ref[...].astype(jnp.float32)

    inv_sig = pl.reciprocal(sig, approx=True)          # EUP vrcp (free-ish slot)
    z = (y - mu) * inv_sig
    ll = -jnp.log(sig) - 0.5 * (z * z) - _HALF_LOG_2PI

    # Mask padded tail elements (flat index >= total). Only the globally last
    # tile can contain padding; the mask is cheap VPU work hidden under DMA.
    base = (c * n_inner + i) * (tile_rows * _LANES)
    row = jax.lax.broadcasted_iota(jnp.int32, ll.shape, 0)
    lane = jax.lax.broadcasted_iota(jnp.int32, ll.shape, 1)
    valid = (base + row * _LANES + lane) < total

    # Elementwise accumulation only in the steady-state loop (no XLU per tile).
    out_ref[...] += jnp.where(valid, ll, 0.0)


def _round_up(x, m):
    return (x + m - 1) // m * m


def loglikelihood_pallas(mu, sigma, target_y):
    """Normal(mu, sigma).log_prob(target_y).sum(-1).sum(-1).mean()."""
    assert mu.shape == sigma.shape == target_y.shape
    assert mu.ndim >= 2, "module sums over the last two axes"

    batch = 1
    for s in mu.shape[:-2]:
        batch *= s
    total = mu.size

    rows = pl.cdiv(total, _LANES)
    tile_rows = min(_MAX_TILE_ROWS, _round_up(pl.cdiv(rows, _NCORES), 8))
    tiles_per_core = pl.cdiv(rows, _NCORES * tile_rows)
    padded_rows = _NCORES * tiles_per_core * tile_rows
    pad = padded_rows * _LANES - total

    def prep(a, pad_value):
        flat = a.reshape(-1)
        if pad:
            flat = jnp.pad(flat, (0, pad), constant_values=pad_value)
        return flat.reshape(padded_rows, _LANES)

    mu2 = prep(mu, 0)
    sig2 = prep(sigma, 1)      # 1.0 keeps log / reciprocal finite in the pad
    y2 = prep(target_y, 0)

    in_spec = pl.BlockSpec((tile_rows, _LANES),
                           lambda c, i: (c * tiles_per_core + i, 0))
    out_spec = pl.BlockSpec((tile_rows, _LANES), lambda c, i: (c, 0))

    partial = pl.pallas_call(
        functools.partial(_ll_kernel, total=total),
        out_shape=jax.ShapeDtypeStruct((_NCORES * tile_rows, _LANES), jnp.float32),
        grid=(_NCORES, tiles_per_core),
        in_specs=[in_spec, in_spec, in_spec],
        out_specs=out_spec,
        compiler_params=pltpu.CompilerParams(
            dimension_semantics=("parallel", "arbitrary")),
    )(mu2, sig2, y2)

    # Tiny epilogue reduce + mean-over-batch in XLA (lane-dense out_spec kept).
    return jnp.sum(partial) / batch


def loglikelihood_reference(mu, sigma, target_y):
    """Pure-JAX reference mirroring torch Normal.log_prob + sum/sum/mean."""
    log_prob = (-jnp.log(sigma) - _HALF_LOG_2PI
                - 0.5 * jnp.square((target_y - mu) / sigma))
    return jnp.mean(jnp.sum(log_prob, axis=(-2, -1)))


def loglikelihood(mu, sigma, target_y, *, min_pallas_elements=64 * 1024):
    """Size-gated dispatch: tiny problems are faster as one fused XLA expression;
    the Pallas kernel pays off once HBM streaming dominates."""
    if mu.size < min_pallas_elements:
        return loglikelihood_reference(mu, sigma, target_y)
    return loglikelihood_pallas(mu, sigma, target_y)


if __name__ == "__main__":
    key = jax.random.PRNGKey(0)

    # Small shapes consistent with the module: p_y_pred = Normal(mu, sigma)
    # over [batch, num_points, y_dim].
    B, N, D = 2, 8, 32
    k1, k2, k3 = jax.random.split(key, 3)
    mu = jax.random.normal(k1, (B, N, D), dtype=jnp.float32)
    sigma = jax.nn.softplus(jax.random.normal(k2, (B, N, D), dtype=jnp.float32)) + 1e-3
    y = jax.random.normal(k3, (B, N, D), dtype=jnp.float32)

    out = loglikelihood_pallas(mu, sigma, y)       # exercise the Pallas kernel
    jax.block_until_ready(out)
    ref = loglikelihood_reference(mu, sigma, y)
    # approx reciprocal => loosened tolerance (loss-level accuracy)
    assert jnp.allclose(out, ref, rtol=2e-2, atol=1e-2), (out, ref)

    # Second shape: total element count not a multiple of 128 -> exercises the
    # in-kernel padding mask.
    B2, N2, D2 = 3, 20, 24
    k4, k5, k6 = jax.random.split(jax.random.PRNGKey(1), 3)
    mu_b = jax.random.normal(k4, (B2, N2, D2), dtype=jnp.float32)
    sigma_b = jax.nn.softplus(jax.random.normal(k5, (B2, N2, D2), dtype=jnp.float32)) + 1e-3
    y_b = jax.random.normal(k6, (B2, N2, D2), dtype=jnp.float32)

    out2 = loglikelihood_pallas(mu_b, sigma_b, y_b)
    jax.block_until_ready(out2)
    ref2 = loglikelihood_reference(mu_b, sigma_b, y_b)
    assert jnp.allclose(out2, ref2, rtol=2e-2, atol=1e-2), (out2, ref2)

    print("KERNEL_OK")
</pallas_src>

<mosaic_0001>
module attributes {stable_mosaic.version = 11 : i64} {
  func.func @_ll_kernel(%arg0: i32, %arg1: i32, %arg2: memref<8x128xf32, #tpu.memory_space<vmem>>, %arg3: memref<8x128xf32, #tpu.memory_space<vmem>>, %arg4: memref<8x128xf32, #tpu.memory_space<vmem>>, %arg5: memref<8x128xf32, #tpu.memory_space<vmem>>) attributes {dimension_semantics = [#tpu.dimension_semantics<parallel>, #tpu.dimension_semantics<arbitrary>], iteration_bounds = array<i64: 2, 1>, scalar_prefetch = 0 : i64, scratch_operands = 0 : i64, tpu.core_type = #tpu.core_type<tc>, window_params = [{transform_indices = @transform_0, window_bounds = array<i64: 8, 128>}, {transform_indices = @transform_1, window_bounds = array<i64: 8, 128>}, {transform_indices = @transform_2, window_bounds = array<i64: 8, 128>}, {transform_indices = @transform_3, window_bounds = array<i64: 8, 128>}]} {
    %c0_i32 = arith.constant 0 : i32
    %0 = arith.cmpi eq, %arg1, %c0_i32 : i32
    %1 = arith.extui %0 : i1 to i32
    %c0_i32_0 = arith.constant 0 : i32
    %2 = arith.cmpi ne, %1, %c0_i32_0 : i32
    scf.if %2 {
      %cst_13 = arith.constant 0.000000e+00 : f32
      %35 = vector.broadcast %cst_13 : f32 to vector<8x128xf32>
      %c0_14 = arith.constant 0 : index
      %c0_15 = arith.constant 0 : index
      %36 = vector.load %arg5[%c0_14, %c0_15] : memref<8x128xf32, #tpu.memory_space<vmem>>, vector<8x128xf32>
      tpu.vector_store %arg5[%c0_14, %c0_15], %35 {strides = array<i32>} : memref<8x128xf32, #tpu.memory_space<vmem>>, vector<8x128xf32>,
    } else {
    }
    %c0 = arith.constant 0 : index
    %c0_1 = arith.constant 0 : index
    %3 = vector.load %arg2[%c0, %c0_1] : memref<8x128xf32, #tpu.memory_space<vmem>>, vector<8x128xf32>
    %c0_2 = arith.constant 0 : index
    %c0_3 = arith.constant 0 : index
    %4 = vector.load %arg3[%c0_2, %c0_3] : memref<8x128xf32, #tpu.memory_space<vmem>>, vector<8x128xf32>
    %c0_4 = arith.constant 0 : index
    %c0_5 = arith.constant 0 : index
    %5 = vector.load %arg4[%c0_4, %c0_5] : memref<8x128xf32, #tpu.memory_space<vmem>>, vector<8x128xf32>
    %6 = tpu.reciprocal %4 {approx = true} : vector<8x128xf32> -> vector<8x128xf32>
    %7 = arith.subf %5, %3 : vector<8x128xf32>
    %8 = arith.mulf %7, %6 : vector<8x128xf32>
    %9 = math.log %4 : vector<8x128xf32>
    %cst = arith.constant 0.000000e+00 : f32
    %10 = vector.broadcast %cst : f32 to vector<8x128xf32>
    %11 = arith.subf %10, %9 : vector<8x128xf32>
    %12 = arith.mulf %8, %8 : vector<8x128xf32>
    %cst_6 = arith.constant 5.000000e-01 : f32
    %13 = vector.broadcast %cst_6 : f32 to vector<8x128xf32>
    %14 = arith.mulf %13, %12 : vector<8x128xf32>
    %15 = arith.subf %11, %14 : vector<8x128xf32>
    %cst_7 = arith.constant 0.918938517 : f32
    %16 = vector.broadcast %cst_7 : f32 to vector<8x128xf32>
    %17 = arith.subf %15, %16 : vector<8x128xf32>
    %c1_i32 = arith.constant 1 : i32
    %18 = arith.muli %arg0, %c1_i32 : i32
    %19 = arith.addi %18, %arg1 : i32
    %c1024_i32 = arith.constant 1024 : i32
    %20 = arith.muli %19, %c1024_i32 : i32
    %21 = tpu.iota {dimensions = array<i32: 0>} : vector<8x128xi32>
    %22 = tpu.iota {dimensions = array<i32: 1>} : vector<8x128xi32>
    %c128_i32 = arith.constant 128 : i32
    %23 = vector.broadcast %c128_i32 : i32 to vector<8x128xi32>
    %24 = arith.muli %21, %23 : vector<8x128xi32>
    %25 = vector.broadcast %20 : i32 to vector<8x128xi32>
    %26 = arith.addi %25, %24 : vector<8x128xi32>
    %27 = arith.addi %26, %22 : vector<8x128xi32>
    %c512_i32 = arith.constant 512 : i32
    %28 = vector.broadcast %c512_i32 : i32 to vector<8x128xi32>
    %29 = arith.cmpi slt, %27, %28 : vector<8x128xi32>
    %c0_8 = arith.constant 0 : index
    %c0_9 = arith.constant 0 : index
    %30 = vector.load %arg5[%c0_8, %c0_9] : memref<8x128xf32, #tpu.memory_space<vmem>>, vector<8x128xf32>
    %cst_10 = arith.constant 0.000000e+00 : f32
    %31 = vector.broadcast %cst_10 : f32 to vector<8x128xf32>
    %32 = arith.select %29, %17, %31 : vector<8x128xi1>, vector<8x128xf32>
    %33 = arith.addf %30, %32 : vector<8x128xf32>
    %c0_11 = arith.constant 0 : index
    %c0_12 = arith.constant 0 : index
    %34 = vector.load %arg5[%c0_11, %c0_12] : memref<8x128xf32, #tpu.memory_space<vmem>>, vector<8x128xf32>
    tpu.vector_store %arg5[%c0_11, %c0_12], %33 {strides = array<i32>} : memref<8x128xf32, #tpu.memory_space<vmem>>, vector<8x128xf32>,
    return
  }
  func.func @transform_0(%arg0: i32, %arg1: i32) -> (i32, i32) {
    %c1_i32 = arith.constant 1 : i32
    %0 = arith.muli %arg0, %c1_i32 : i32
    %1 = arith.addi %0, %arg1 : i32
    %c0_i32 = arith.constant 0 : i32
    %c0_i32_0 = arith.constant 0 : i32
    return %1, %c0_i32 : i32, i32
  }
  func.func @transform_1(%arg0: i32, %arg1: i32) -> (i32, i32) {
    %c1_i32 = arith.constant 1 : i32
    %0 = arith.muli %arg0, %c1_i32 : i32
    %1 = arith.addi %0, %arg1 : i32
    %c0_i32 = arith.constant 0 : i32
    %c0_i32_0 = arith.constant 0 : i32
    return %1, %c0_i32 : i32, i32
  }
  func.func @transform_2(%arg0: i32, %arg1: i32) -> (i32, i32) {
    %c1_i32 = arith.constant 1 : i32
    %0 = arith.muli %arg0, %c1_i32 : i32
    %1 = arith.addi %0, %arg1 : i32
    %c0_i32 = arith.constant 0 : i32
    %c0_i32_0 = arith.constant 0 : i32
    return %1, %c0_i32 : i32, i32
  }
  func.func @transform_3(%arg0: i32, %arg1: i32) -> (i32, i32) {
    %c0_i32 = arith.constant 0 : i32
    %c0_i32_0 = arith.constant 0 : i32
    return %arg0, %c0_i32 : i32, i32
  }
}

</mosaic_0001>

<llo_original>
// kernel: tpu_custom_call.1
$region0: #{tpu_custom_call.1}
  #allocation0 [shape = 'u32[]', space=smem, size = 0x4, offset = 0x4, fixed_abs, tag = 'smem constant byte address 0x4 - core index']
  #allocation1 [shape = 'u32[72,128]{1,0:T(1,128)}', space=vmem, size = 0x9000, scoped, tag = 'internal scratch']
  %s0 = inlined_call_operand.hbm [shape: f32[16,128], index: 0, kind: input, shape index: {}]
  %s1 = inlined_call_operand.hbm [shape: f32[16,128], index: 1, kind: input, shape index: {}]
  %s2 = inlined_call_operand.hbm [shape: f32[16,128], index: 2, kind: input, shape index: {}]
  %s3 = inlined_call_operand.hbm [shape: f32[16,128], index: 3, kind: output, shape index: {}]
  %s4 = sld [smem:[#allocation0]]
  $region61: #{tpu_custom_call.1} parent=0
    _
  %s6 = ssub.s32 1, %s4
  %s7 = scalar_select 0, %s6, %s4
  $region1: #{tpu_custom_call.1} parent=0
    #allocation2 [shape = 'u8[8192]{0}', space=vmem, size = 0x2000, scoped, tag = 'input window, operand 0']
    #allocation3 [shape = 's32[2]{0}', space=sflag, size = 0x8, scoped, tag = 'scoped memory for tpu_custom_call.1']
    #allocation4 [shape = 's32[2]{0}', space=sflag, size = 0x8, scoped, tag = 'scoped memory for tpu_custom_call.1']
    #allocation5 [shape = 'u8[8192]{0}', space=vmem, size = 0x2000, scoped, tag = 'input window, operand 1']
    #allocation6 [shape = 's32[2]{0}', space=sflag, size = 0x8, scoped, tag = 'scoped memory for tpu_custom_call.1']
    #allocation7 [shape = 'u8[8192]{0}', space=vmem, size = 0x2000, scoped, tag = 'input window, operand 2']
    #allocation8 [shape = 'u8[8192]{0}', space=vmem, size = 0x2000, scoped, tag = 'output window, operand 0']
    %8 = vsyncpa [#allocation3], 0
    %s9 = scalar_lea.sflag [#allocation3], 1
    %10 = vsyncpa %s9, 0
    %11 = vsyncpa [#allocation6], 0
    %s12 = scalar_lea.sflag [#allocation6], 1
    %13 = vsyncpa %s12, 0
    %14 = vsyncpa [#allocation4], 0
    %s15 = scalar_lea.sflag [#allocation4], 1
    %16 = vsyncpa %s15, 0
    loop: start=0, step=1, limit=4
    $region2: #{tpu_custom_call.1} parent=1 // loop_pre_header
      _
    $region3: #{tpu_custom_call.1} parent=1 // loop_header
      %s18 = sphi 0, %s22
      %p19 = scmp.ge.s32.totalorder %s18, 4
      %s25 = sphi 0, %s37
      %s26 = sphi 0, %s33
      %s27 = sphi 0, %s25
      %s28 = sphi 0, %s26
      %s29 = sphi 0, %s27
      %s30 = sphi 0, %s28
      %s42 = sphi 0, %s44
      %s45 = sphi 0, %s42
      %s46 = sphi 0, %s45
      %s62 = sphi 0, %s46
      %s70 = sphi 0, %s72
      %s73 = sphi 0, %s70
      %s74 = sphi 0, %s73
      %s90 = sphi 0, %s74
      %s98 = sphi 0, %s100
      %s101 = sphi 0, %s98
      %s102 = sphi 0, %s101
      %s118 = sphi 0, %s102
      %s124 = sphi 0, %s126
      %s127 = sphi 0, %s124
      %s128 = sphi 0, %s127
      %s144 = sphi 0, %s128
    $region4: #{tpu_custom_call.1} parent=1 // loop_header_branch
      %21 = sbr.rel (%p19) target = $region8
    $region5: #{tpu_custom_call.1} parent=1 // loop_body
      %s23 = ssub.s32 %s18, 1
      %s24 = ssub.s32 %s18, 2
      %s31 = sadd.s32 1, %s26
      %p32 = scmp.ge.s32.totalorder %s31, 1
      %s33 = scalar_select %p32, 0, %s31
      %s34 = sadd.s32 1, %s25
      %s35 = scalar_select %p32, %s34, %s25
      %p36 = scmp.ge.s32.totalorder %s35, 2
      %s37 = scalar_select %p36, 0, %s35
      %s38 = sadd.s32 %s25, %s26
      %s39 = sadd.s32 %s37, %s33
      %s40 = ssub.s32 %s38, %s39
      %p41 = scmp.eq.s32.totalorder %s40, 0
      %s43 = sadd.s32 %s42, 1
      %s44 = scalar_select %p41, %s42, %s43
      %p47 = pneg %p41
      %p48 = scmp.eq.s32.totalorder %s18, 1
      %p49 = por %p47, %p48
      %p50 = scmp.ne.s32.totalorder %s42, %s45
      %p51 = scmp.eq.s32.totalorder %s18, 0
      %p52 = por %p50, %p51
      %p53 = scmp.ne.s32.totalorder %s42, %s45
      %p54 = scmp.eq.s32.totalorder %s23, 1
      %p55 = por %p53, %p54
      %p56 = scmp.ne.s32.totalorder %s45, %s46
      %p57 = scmp.eq.s32.totalorder %s23, 0
      %p58 = por %p56, %p57
      %p59 = scmp.ne.s32.totalorder %s45, %s46
      %p60 = scmp.eq.s32.totalorder %s24, 1
      %p61 = por %p59, %p60
      %p63 = scmp.ne.s32.totalorder %s46, %s62
      %p64 = scmp.eq.s32.totalorder %s24, 0
      %p65 = por %p63, %p64
      %s66 = sadd.s32 %s25, %s26
      %s67 = sadd.s32 %s37, %s33
      %s68 = ssub.s32 %s66, %s67
      %p69 = scmp.eq.s32.totalorder %s68, 0
      %s71 = sadd.s32 %s70, 1
      %s72 = scalar_select %p69, %s70, %s71
      %p75 = pneg %p69
      %p76 = scmp.eq.s32.totalorder %s18, 1
      %p77 = por %p75, %p76
      %p78 = scmp.ne.s32.totalorder %s70, %s73
      %p79 = scmp.eq.s32.totalorder %s18, 0
      %p80 = por %p78, %p79
      %p81 = scmp.ne.s32.totalorder %s70, %s73
      %p82 = scmp.eq.s32.totalorder %s23, 1
      %p83 = por %p81, %p82
      %p84 = scmp.ne.s32.totalorder %s73, %s74
      %p85 = scmp.eq.s32.totalorder %s23, 0
      %p86 = por %p84, %p85
      %p87 = scmp.ne.s32.totalorder %s73, %s74
      %p88 = scmp.eq.s32.totalorder %s24, 1
      %p89 = por %p87, %p88
      %p91 = scmp.ne.s32.totalorder %s74, %s90
      %p92 = scmp.eq.s32.totalorder %s24, 0
      %p93 = por %p91, %p92
      %s94 = sadd.s32 %s25, %s26
      %s95 = sadd.s32 %s37, %s33
      %s96 = ssub.s32 %s94, %s95
      %p97 = scmp.eq.s32.totalorder %s96, 0
      %s99 = sadd.s32 %s98, 1
      %s100 = scalar_select %p97, %s98, %s99
      %p103 = pneg %p97
      %p104 = scmp.eq.s32.totalorder %s18, 1
      %p105 = por %p103, %p104
      %p106 = scmp.ne.s32.totalorder %s98, %s101
      %p107 = scmp.eq.s32.totalorder %s18, 0
      %p108 = por %p106, %p107
      %p109 = scmp.ne.s32.totalorder %s98, %s101
      %p110 = scmp.eq.s32.totalorder %s23, 1
      %p111 = por %p109, %p110
      %p112 = scmp.ne.s32.totalorder %s101, %s102
      %p113 = scmp.eq.s32.totalorder %s23, 0
      %p114 = por %p112, %p113
      %p115 = scmp.ne.s32.totalorder %s101, %s102
      %p116 = scmp.eq.s32.totalorder %s24, 1
      %p117 = por %p115, %p116
      %p119 = scmp.ne.s32.totalorder %s102, %s118
      %p120 = scmp.eq.s32.totalorder %s24, 0
      %p121 = por %p119, %p120
      %s122 = ssub.s32 %s25, %s37
      %p123 = scmp.eq.s32.totalorder %s122, 0
      %s125 = sadd.s32 %s124, 1
      %s126 = scalar_select %p123, %s124, %s125
      %p129 = pneg %p123
      %p130 = scmp.eq.s32.totalorder %s18, 1
      %p131 = por %p129, %p130
      %p132 = scmp.ne.s32.totalorder %s124, %s127
      %p133 = scmp.eq.s32.totalorder %s18, 0
      %p134 = por %p132, %p133
      %p135 = scmp.ne.s32.totalorder %s124, %s127
      %p136 = scmp.eq.s32.totalorder %s23, 1
      %p137 = por %p135, %p136
      %p138 = scmp.ne.s32.totalorder %s127, %s128
      %p139 = scmp.eq.s32.totalorder %s23, 0
      %p140 = por %p138, %p139
      %p141 = scmp.ne.s32.totalorder %s127, %s128
      %p142 = scmp.eq.s32.totalorder %s24, 1
      %p143 = por %p141, %p142
      %p145 = scmp.ne.s32.totalorder %s128, %s144
      %p146 = scmp.eq.s32.totalorder %s24, 0
      %p147 = por %p145, %p146
      %p148 = scmp.le.s32.totalorder 1, %s18
      %p149 = scmp.lt.s32.totalorder %s18, 3
      %p150 = pnand %p148, %p149
      %p151 = pneg %p150
      // Predicated region
      $region9: #{tpu_custom_call.1} parent=5 // pred_check
        _
      $region10: #{tpu_custom_call.1} parent=5 // pred_check_branch
        %153 = sbr.rel (%p150) target = $region12
      $region11: #{tpu_custom_call.1} parent=5 // pred_region
        %s154 = ssub.s32 %s18, 1
      $region12: #{tpu_custom_call.1} parent=5 // pred_fallthru
        _
      %p155 = scmp.lt.s32.totalorder %s18, 2
      // Predicated region
      $region13: #{tpu_custom_call.1} parent=5 // pred_check
        %p156 = pneg %p155
      $region14: #{tpu_custom_call.1} parent=5 // pred_check_branch
        %158 = sbr.rel (%p156) target = $region16
      $region15: #{tpu_custom_call.1} parent=5 // pred_region
        // Predicated region
        $region17: #{tpu_custom_call.1} parent=15 // pred_check
          %p159 = pneg %p52
        $region18: #{tpu_custom_call.1} parent=15 // pred_check_branch
          %161 = sbr.rel (%p159) target = $region20
        $region19: #{tpu_custom_call.1} parent=15 // pred_region
          %s162 = sand.u32 %s42, 1
          %s163 = scalar_lea.sflag [#allocation3], %s162
          %s164 = sand.u32 %s42, 1
          %s165 = smul.addr %s164, 8
          %s166 = scalar_lea.vmem [#allocation2], %s165
          %s167 = sadd.s32 %s25, %s26
          %169 = vsyncadd %s163, 0
          %s170 = smul.addr %s167, 8
          %s171 = scalar_lea.hbm %s0, %s170
          %s173 = sshll.u32 %s171, 4
          %s174 = int_to_ptr.hbm [resolvable:$true] %s173
          %s175 = sshll.u32 %s166, 4
          %s176 = int_to_ptr.vmem [resolvable:$true] %s175
          %178 = dma.hbm_to_vmem [thread:$0]  %s174, 128, %s176, %s163
        $region20: #{tpu_custom_call.1} parent=15 // pred_fallthru
          _
        // Predicated region
        $region21: #{tpu_custom_call.1} parent=15 // pred_check
          %p179 = pneg %p80
        $region22: #{tpu_custom_call.1} parent=15 // pred_check_branch
          %181 = sbr.rel (%p179) target = $region24
        $region23: #{tpu_custom_call.1} parent=15 // pred_region
          %s182 = sand.u32 %s18, 1
          %s183 = scalar_lea.sflag [#allocation6], %s182
          %s184 = sand.u32 %s70, 1
          %s185 = smul.addr %s184, 8
          %s186 = scalar_lea.vmem [#allocation5], %s185
          %s187 = sadd.s32 %s25, %s26
          %189 = vsyncadd %s183, 0
          %s190 = smul.addr %s187, 8
          %s191 = scalar_lea.hbm %s1, %s190
          %s193 = sshll.u32 %s191, 4
          %s194 = int_to_ptr.hbm [resolvable:$true] %s193
          %s195 = sshll.u32 %s186, 4
          %s196 = int_to_ptr.vmem [resolvable:$true] %s195
          %198 = dma.hbm_to_vmem [thread:$0]  %s194, 128, %s196, %s183
        $region24: #{tpu_custom_call.1} parent=15 // pred_fallthru
          _
        // Predicated region
        $region25: #{tpu_custom_call.1} parent=15 // pred_check
          %p199 = pneg %p108
        $region26: #{tpu_custom_call.1} parent=15 // pred_check_branch
          %201 = sbr.rel (%p199) target = $region28
        $region27: #{tpu_custom_call.1} parent=15 // pred_region
          %s202 = sand.u32 %s18, 1
          %s203 = scalar_lea.sflag [#allocation6], %s202
          %s204 = sand.u32 %s98, 1
          %s205 = smul.addr %s204, 8
          %s206 = scalar_lea.vmem [#allocation7], %s205
          %s207 = sadd.s32 %s25, %s26
          %209 = vsyncadd %s203, 0
          %s210 = smul.addr %s207, 8
          %s211 = scalar_lea.hbm %s2, %s210
          %s213 = sshll.u32 %s211, 4
          %s214 = int_to_ptr.hbm [resolvable:$true] %s213
          %s215 = sshll.u32 %s206, 4
          %s216 = int_to_ptr.vmem [resolvable:$true] %s215
          %218 = dma.hbm_to_vmem [thread:$0]  %s214, 128, %s216, %s203
        $region28: #{tpu_custom_call.1} parent=15 // pred_fallthru
          _
      $region16: #{tpu_custom_call.1} parent=5 // pred_fallthru
        _
      %p219 = scmp.le.s32.totalorder 1, %s18
      %p220 = scmp.lt.s32.totalorder %s18, 3
      %p221 = pnand %p219, %p220
      %p222 = pneg %p221
      // Predicated region
      $region29: #{tpu_custom_call.1} parent=5 // pred_check
        _
      $region30: #{tpu_custom_call.1} parent=5 // pred_check_branch
        %224 = sbr.rel (%p221) target = $region32
      $region31: #{tpu_custom_call.1} parent=5 // pred_region
        %s225 = ssub.s32 %s18, 1
        %s226 = sand.u32 %s45, 1
        %s227 = scalar_lea.sflag [#allocation3], %s226
        %s228 = sand.u32 %s45, 1
        %s229 = smul.addr %s228, 8
        %s230 = scalar_lea.vmem [#allocation2], %s229
        // Predicated region
        $region33: #{tpu_custom_call.1} parent=31 // pred_check
          %p231 = pneg %p58
        $region34: #{tpu_custom_call.1} parent=31 // pred_check_branch
          %233 = sbr.rel (%p231) target = $region36
        $region35: #{tpu_custom_call.1} parent=31 // pred_region
          %235 = dma.done %s227, 128
        $region36: #{tpu_custom_call.1} parent=31 // pred_fallthru
          _
        %s236 = sand.u32 %s23, 1
        %s237 = scalar_lea.sflag [#allocation6], %s236
        %s238 = sand.u32 %s73, 1
        %s239 = smul.addr %s238, 8
        %s240 = scalar_lea.vmem [#allocation5], %s239
        // Predicated region
        $region37: #{tpu_custom_call.1} parent=31 // pred_check
          %p241 = pneg %p86
        $region38: #{tpu_custom_call.1} parent=31 // pred_check_branch
          %243 = sbr.rel (%p241) target = $region40
        $region39: #{tpu_custom_call.1} parent=31 // pred_region
          %245 = dma.done %s237, 128
        $region40: #{tpu_custom_call.1} parent=31 // pred_fallthru
          _
        %s246 = sand.u32 %s23, 1
        %s247 = scalar_lea.sflag [#allocation6], %s246
        %s248 = sand.u32 %s101, 1
        %s249 = smul.addr %s248, 8
        %s250 = scalar_lea.vmem [#allocation7], %s249
        // Predicated region
        $region41: #{tpu_custom_call.1} parent=31 // pred_check
          %p251 = pneg %p114
        $region42: #{tpu_custom_call.1} parent=31 // pred_check_branch
          %253 = sbr.rel (%p251) target = $region44
        $region43: #{tpu_custom_call.1} parent=31 // pred_region
          %255 = dma.done %s247, 128
        $region44: #{tpu_custom_call.1} parent=31 // pred_fallthru
          _
        %s256 = sand.u32 %s45, 1
        %s257 = scalar_lea.sflag [#allocation3], %s256
        %s258 = sand.u32 %s45, 1
        %s259 = smul.addr %s258, 8
        %s260 = scalar_lea.vmem [#allocation2], %s259
        %p261 = pneg %p58
        %p262 = pneg %p55
        %s263 = sand.u32 %s23, 1
        %s264 = scalar_lea.sflag [#allocation6], %s263
        %s265 = sand.u32 %s73, 1
        %s266 = smul.addr %s265, 8
        %s267 = scalar_lea.vmem [#allocation5], %s266
        %p268 = pneg %p86
        %p269 = pneg %p83
        %s270 = sand.u32 %s23, 1
        %s271 = scalar_lea.sflag [#allocation6], %s270
        %s272 = sand.u32 %s101, 1
        %s273 = smul.addr %s272, 8
        %s274 = scalar_lea.vmem [#allocation7], %s273
        %p275 = pneg %p114
        %p276 = pneg %p111
        %p277 = pneg %p140
        %p278 = pneg %p137
        %s279 = sand.u32 %s127, 1
        %s280 = scalar_lea.sflag [#allocation4], %s279
        %s281 = sand.u32 %s127, 1
        %s282 = smul.addr %s281, 8
        %s283 = scalar_lea.vmem [#allocation8], %s282
        %s284 = sadd.s32 %s27, %s28
        %s285 = sadd.s32 %s27, %s28
        %s286 = sadd.s32 %s27, %s28
        %p287 = scmp.eq.s32.totalorder %s28, 0
        // Predicated region
        $region45: #{tpu_custom_call.1} parent=31 // pred_check
          %p288 = pneg %p287
        $region46: #{tpu_custom_call.1} parent=31 // pred_check_branch
          %290 = sbr.rel (%p288) target = $region48
        $region47: #{tpu_custom_call.1} parent=31 // pred_region
          %291 = vst [vmem:[%s283] sm:$0xff] 0.0
        $region48: #{tpu_custom_call.1} parent=31 // pred_fallthru
          _
        %v292 = vld [vmem:[%s230] sm:$0xff]
        %v293 = vld [vmem:[%s240] sm:$0xff]
        %v294 = vld [vmem:[%s250] sm:$0xff]
        %v295 = vrcp.pop %v293
        %v296 = vsub.f32 %v294, %v292
        %v297 = vmul.f32 %v296, %v295
        %v298 = vlog2.pop %v293
        %v299 = vmul.f32 %v298, 0.6931472
        %v300 = vsub.f32 0.0, %v299
        %v301 = vmul.f32 %v297, %v297
        %v302 = vmul.f32 %v301, 0.5
        %v303 = vsub.f32 %v300, %v302
        %v304 = vsub.f32 %v303, 0.9189385
        %s305 = sadd.s32 %s27, %s28
        %s306 = smul.u32 %s305, 1024
        %v307 = vlaneseq
        %v308 = vshrl.u32 %v307, 7
        %v309 = vlaneseq
        %v310 = vand.u32 %v309, 127
        %v311 = vmul.u32 %v308, 128
        %v312 = vstv %s306
        %v313 = vadd.s32 %v312, %v311
        %v314 = vadd.s32 %v313, %v310
        %vm315 = vcmp.lt.s32.totalorder %v314, 512
        %v316 = vld [vmem:[%s283] sm:$0xff]
        %v317 = vsel %vm315, %v304, 0.0
        %v318 = vadd.f32 %v316, %v317
        %319 = vst [vmem:[%s283] sm:$0xff] %v318
        %s320 = sand.u32 %s127, 1
        %s321 = scalar_lea.sflag [#allocation4], %s320
        %s322 = sand.u32 %s127, 1
        %s323 = smul.addr %s322, 8
        %s324 = scalar_lea.vmem [#allocation8], %s323
        // Predicated region
        $region49: #{tpu_custom_call.1} parent=31 // pred_check
          %p325 = pneg %p137
        $region50: #{tpu_custom_call.1} parent=31 // pred_check_branch
          %327 = sbr.rel (%p325) target = $region52
        $region51: #{tpu_custom_call.1} parent=31 // pred_region
          %329 = vsyncadd %s321, 0
          %s330 = smul.addr %s27, 8
          %s331 = scalar_lea.hbm %s3, %s330
          %s333 = sshll.u32 %s324, 4
          %s334 = int_to_ptr.vmem [resolvable:$true] %s333
          %s335 = sshll.u32 %s331, 4
          %s336 = int_to_ptr.hbm [resolvable:$true] %s335
          %338 = dma.vmem_to_hbm [thread:$0]  %s334, 128, %s336, %s321
        $region52: #{tpu_custom_call.1} parent=31 // pred_fallthru
          _
      $region32: #{tpu_custom_call.1} parent=5 // pred_fallthru
        _
      %p339 = scmp.le.s32.totalorder 2, %s18
      // Predicated region
      $region53: #{tpu_custom_call.1} parent=5 // pred_check
        %p340 = pneg %p339
      $region54: #{tpu_custom_call.1} parent=5 // pred_check_branch
        %342 = sbr.rel (%p340) target = $region56
      $region55: #{tpu_custom_call.1} parent=5 // pred_region
        %s343 = ssub.s32 %s18, 2
        // Predicated region
        $region57: #{tpu_custom_call.1} parent=55 // pred_check
          %p344 = pneg %p143
        $region58: #{tpu_custom_call.1} parent=55 // pred_check_branch
          %346 = sbr.rel (%p344) target = $region60
        $region59: #{tpu_custom_call.1} parent=55 // pred_region
          %s347 = sand.u32 %s128, 1
          %s348 = scalar_lea.sflag [#allocation4], %s347
          %s349 = sand.u32 %s128, 1
          %s350 = smul.addr %s349, 8
          %s351 = scalar_lea.vmem [#allocation8], %s350
          %353 = dma.done %s348, 128
        $region60: #{tpu_custom_call.1} parent=55 // pred_fallthru
          _
      $region56: #{tpu_custom_call.1} parent=5 // pred_fallthru
        _
    $region6: #{tpu_custom_call.1} parent=1 // loop_footer
      %s22 = sadd.s32 1, %s18
    $region7: #{tpu_custom_call.1} parent=1 // loop_footer_branch
      %17 = sbr.rel target = $region3
    $region8: #{tpu_custom_call.1} parent=1 // loop_exit
      _
    %354 = vsyncpa [#allocation3], 1
    %s355 = scalar_lea.sflag [#allocation3], 1
    %356 = vsyncpa %s355, 1
    %357 = vsyncpa [#allocation6], 1
    %s358 = scalar_lea.sflag [#allocation6], 1
    %359 = vsyncpa %s358, 1
    %360 = vsyncpa [#allocation4], 1
    %s361 = scalar_lea.sflag [#allocation4], 1
    %362 = vsyncpa %s361, 1

</llo_original>
